<compile_context>
chip_gen: v7x
topology: tpu7x:2x2x1
jax: 0.10.0
libtpu: 0.0.40
codegen_flags: <defaults>
</compile_context>

<pallas_src>
import jax
import jax.numpy as jnp
from jax.experimental import pallas as pl
from jax.experimental.pallas import tpu as pltpu


def _round_up(a: int, b: int) -> int:
    return ((a + b - 1) // b) * b


def _rbf_kernel(x_ref, coeff_ref, o_ref):
    # x_ref:     (R, k)       k consecutive flattened distances per row
    # coeff_ref: (k, k*n_rbf) row j = coeff in lane group j, zeros elsewhere
    # o_ref:     (R, k*n_rbf) lane-dense output tile
    k = x_ref.shape[-1]
    x = x_ref[...]                                   # (R, k)

    x0 = x[:, 0:1]                                   # square at narrow (R, 1) width
    arg = (x0 * x0) * coeff_ref[0:1, :]              # (R,1)*(1,L) -> (R, L)
    for j in range(1, k):                            # k <= 8, fully unrolled
        xj = x[:, j:j + 1]
        arg = arg + (xj * xj) * coeff_ref[j:j + 1, :]

    o_ref[...] = jnp.exp(arg)


def gaussian_rbf_centered(inputs, widths):
    """Pallas implementation of schnetpack GaussianRBFCentered.forward.

    offsets are identically zero for the centered variant, so they are folded out.
    """
    inputs = jnp.asarray(inputs, jnp.float32)
    widths = jnp.asarray(widths, jnp.float32)
    n_rbf = widths.shape[0]

    orig_shape = inputs.shape
    flat = inputs.reshape(-1)
    m = flat.shape[0]

    # ---- fold factor: make the output lane width a multiple of 128 when cheap ----
    if 16 <= n_rbf < 128 and 128 % n_rbf == 0:
        k = 128 // n_rbf
    else:
        k = 1                                        # n_rbf >= 128 is already lane-dense
    lane_w = k * n_rbf

    # ---- tile sizing: ~1 MiB output tile, sublane aligned ----
    target_rows = max(8, ((1 << 20) // (lane_w * 4)) // 8 * 8)

    rows = _round_up(pl.cdiv(m, k), 8)
    num_tiles = pl.cdiv(rows, target_rows)
    if num_tiles == 1 and rows >= 16:
        num_tiles = 2                                # let v7x's 2 TensorCores both work
    tile_rows = _round_up(pl.cdiv(rows, num_tiles), 8)
    rows = num_tiles * tile_rows
    m_pad = rows * k

    if m_pad != m:
        flat = jnp.pad(flat, (0, m_pad - m))
    x2d = flat.reshape(rows, k)

    # ---- coeff matrix: row j holds coeff in lane group j, zeros elsewhere ----
    coeff = -0.5 / (widths * widths)                 # (n_rbf,)
    lane = jnp.arange(lane_w)
    grp_mask = (lane // n_rbf)[None, :] == jnp.arange(k)[:, None]      # (k, lane_w)
    coeff_mat = jnp.where(grp_mask, jnp.tile(coeff, k)[None, :], 0.0).astype(jnp.float32)

    out = pl.pallas_call(
        _rbf_kernel,
        out_shape=jax.ShapeDtypeStruct((rows, lane_w), jnp.float32),
        grid_spec=pltpu.PrefetchScalarGridSpec(
            num_scalar_prefetch=0,
            grid=(num_tiles,),
            in_specs=[
                pl.BlockSpec((tile_rows, k), lambda i: (i, 0)),
                pl.BlockSpec((k, lane_w), lambda i: (0, 0)),
            ],
            out_specs=pl.BlockSpec((tile_rows, lane_w), lambda i: (i, 0)),
        ),
        compiler_params=pltpu.CompilerParams(
            dimension_semantics=("parallel",),
        ),
    )(x2d, coeff_mat)

    # (rows, k*n_rbf) is byte-identical to (m_pad, n_rbf) row-major -> free reshape.
    out = out.reshape(m_pad, n_rbf)
    if m_pad != m:
        out = out[:m]                                # only pays an extra pass when padded
    return out.reshape(orig_shape + (n_rbf,))


class GaussianRBFCentered:
    """JAX/Pallas port of schnetpack.nn.radial.GaussianRBFCentered."""

    def __init__(self, n_rbf: int, cutoff: float, start: float = 1.0,
                 trainable: bool = False):
        self.n_rbf = n_rbf
        # Deterministic parameter init, exactly as the PyTorch __init__.
        self.widths = jnp.linspace(start, cutoff, n_rbf, dtype=jnp.float32)
        # offsets are identically zero for the centered variant; kept for API parity,
        # but folded out of the kernel (no subtraction, no extra DMA).
        self.offsets = jnp.zeros_like(self.widths)
        # `trainable` only affects whether these are Parameters; forward is identical.

    def __call__(self, inputs):
        return gaussian_rbf_centered(inputs, self.widths)


if __name__ == "__main__":
    key = jax.random.PRNGKey(0)

    # Typical schnetpack usage: inputs are interatomic distances,
    # e.g. shape (batch, n_atoms, n_neighbors). Small deterministic example:
    batch, n_atoms, n_nbr = 2, 8, 8
    n_rbf, cutoff, start = 32, 5.0, 1.0

    inputs = jax.random.uniform(key, (batch, n_atoms, n_nbr),
                                dtype=jnp.float32, minval=0.0, maxval=cutoff)

    module = GaussianRBFCentered(n_rbf=n_rbf, cutoff=cutoff, start=start)
    out = module(inputs)
    out = jax.block_until_ready(out)

    # Pure-JAX reference check (same math as the PyTorch gaussian_rbf).
    coeff = -0.5 / jnp.power(module.widths, 2)
    diff = inputs[..., None] - module.offsets
    ref = jnp.exp(coeff * jnp.power(diff, 2))

    assert out.shape == inputs.shape + (n_rbf,), out.shape
    assert jnp.allclose(out, ref, atol=1e-6, rtol=1e-6), "mismatch vs reference"

    print("KERNEL_OK")
</pallas_src>

<mosaic_0001>
module attributes {stable_mosaic.version = 11 : i64} {
  func.func @_rbf_kernel(%arg0: i32, %arg1: memref<16x4xf32, #tpu.memory_space<vmem>>, %arg2: memref<4x128xf32, #tpu.memory_space<vmem>>, %arg3: memref<16x128xf32, #tpu.memory_space<vmem>>) attributes {dimension_semantics = [#tpu.dimension_semantics<parallel>], iteration_bounds = array<i64: 2>, scalar_prefetch = 0 : i64, scratch_operands = 0 : i64, tpu.core_type = #tpu.core_type<tc>, window_params = [{transform_indices = @transform_0, window_bounds = array<i64: 16, 4>}, {pipeline_mode = #tpu.pipeline_mode<synchronous>, transform_indices = @transform_1, window_bounds = array<i64: 4, 128>}, {transform_indices = @transform_2, window_bounds = array<i64: 16, 128>}]} {
    %c0 = arith.constant 0 : index
    %c0_0 = arith.constant 0 : index
    %0 = vector.load %arg1[%c0, %c0_0] : memref<16x4xf32, #tpu.memory_space<vmem>>, vector<16x4xf32>
    %1 = vector.extract_strided_slice %0 {offsets = [0, 0], sizes = [16, 1], strides = [1, 1]} : vector<16x4xf32> to vector<16x1xf32>
    %2 = arith.mulf %1, %1 : vector<16x1xf32>
    %c0_1 = arith.constant 0 : index
    %c0_2 = arith.constant 0 : index
    %3 = vector.load %arg2[%c0_1, %c0_2] : memref<4x128xf32, #tpu.memory_space<vmem>>, vector<1x128xf32>
    %4 = vector.broadcast %2 : vector<16x1xf32> to vector<16x128xf32>
    %5 = vector.broadcast %3 : vector<1x128xf32> to vector<16x128xf32>
    %6 = arith.mulf %4, %5 : vector<16x128xf32>
    %7 = vector.extract_strided_slice %0 {offsets = [0, 1], sizes = [16, 1], strides = [1, 1]} : vector<16x4xf32> to vector<16x1xf32>
    %8 = arith.mulf %7, %7 : vector<16x1xf32>
    %c1 = arith.constant 1 : index
    %c0_3 = arith.constant 0 : index
    %9 = vector.load %arg2[%c1, %c0_3] : memref<4x128xf32, #tpu.memory_space<vmem>>, vector<1x128xf32>
    %10 = vector.broadcast %8 : vector<16x1xf32> to vector<16x128xf32>
    %11 = vector.broadcast %9 : vector<1x128xf32> to vector<16x128xf32>
    %12 = arith.mulf %10, %11 : vector<16x128xf32>
    %13 = arith.addf %6, %12 : vector<16x128xf32>
    %14 = vector.extract_strided_slice %0 {offsets = [0, 2], sizes = [16, 1], strides = [1, 1]} : vector<16x4xf32> to vector<16x1xf32>
    %15 = arith.mulf %14, %14 : vector<16x1xf32>
    %c2 = arith.constant 2 : index
    %c0_4 = arith.constant 0 : index
    %16 = vector.load %arg2[%c2, %c0_4] : memref<4x128xf32, #tpu.memory_space<vmem>>, vector<1x128xf32>
    %17 = vector.broadcast %15 : vector<16x1xf32> to vector<16x128xf32>
    %18 = vector.broadcast %16 : vector<1x128xf32> to vector<16x128xf32>
    %19 = arith.mulf %17, %18 : vector<16x128xf32>
    %20 = arith.addf %13, %19 : vector<16x128xf32>
    %21 = vector.extract_strided_slice %0 {offsets = [0, 3], sizes = [16, 1], strides = [1, 1]} : vector<16x4xf32> to vector<16x1xf32>
    %22 = arith.mulf %21, %21 : vector<16x1xf32>
    %c3 = arith.constant 3 : index
    %c0_5 = arith.constant 0 : index
    %23 = vector.load %arg2[%c3, %c0_5] : memref<4x128xf32, #tpu.memory_space<vmem>>, vector<1x128xf32>
    %24 = vector.broadcast %22 : vector<16x1xf32> to vector<16x128xf32>
    %25 = vector.broadcast %23 : vector<1x128xf32> to vector<16x128xf32>
    %26 = arith.mulf %24, %25 : vector<16x128xf32>
    %27 = arith.addf %20, %26 : vector<16x128xf32>
    %28 = math.exp %27 : vector<16x128xf32>
    %c0_6 = arith.constant 0 : index
    %c0_7 = arith.constant 0 : index
    %29 = vector.load %arg3[%c0_6, %c0_7] : memref<16x128xf32, #tpu.memory_space<vmem>>, vector<16x128xf32>
    tpu.vector_store %arg3[%c0_6, %c0_7], %28 {strides = array<i32>} : memref<16x128xf32, #tpu.memory_space<vmem>>, vector<16x128xf32>,
    return
  }
  func.func @transform_0(%arg0: i32) -> (i32, i32) {
    %c0_i32 = arith.constant 0 : i32
    %c0_i32_0 = arith.constant 0 : i32
    return %arg0, %c0_i32 : i32, i32
  }
  func.func @transform_1(%arg0: i32) -> (i32, i32) {
    %c0_i32 = arith.constant 0 : i32
    %c0_i32_0 = arith.constant 0 : i32
    %c0_i32_1 = arith.constant 0 : i32
    return %c0_i32, %c0_i32_0 : i32, i32
  }
  func.func @transform_2(%arg0: i32) -> (i32, i32) {
    %c0_i32 = arith.constant 0 : i32
    %c0_i32_0 = arith.constant 0 : i32
    return %arg0, %c0_i32 : i32, i32
  }
}

</mosaic_0001>

<llo_original>
// kernel: tpu_custom_call.1
$region0: #{tpu_custom_call.1}
  #allocation0 [shape = 'u32[]', space=smem, size = 0x4, offset = 0x4, fixed_abs, tag = 'smem constant byte address 0x4 - core index']
  #allocation1 [shape = 'u32[144,128]{1,0:T(1,128)}', space=vmem, size = 0x12000, scoped, tag = 'internal scratch']
  %s0 = inlined_call_operand.vmem [shape: f32[32,4], index: 0, kind: input, shape index: {}]
  %s1 = inlined_call_operand.vmem [shape: f32[4,128], index: 1, kind: input, shape index: {}]
  %s2 = inlined_call_operand.hbm [shape: f32[32,128], index: 2, kind: output, shape index: {}]
  %s3 = sld [smem:[#allocation0]]
  $region41: #{tpu_custom_call.1} parent=0
    _
  %s5 = ssub.s32 1, %s3
  %s6 = scalar_select 0, %s5, %s3
  $region1: #{tpu_custom_call.1} parent=0
    #allocation2 [shape = 'u8[16384]{0}', space=vmem, size = 0x4000, scoped, tag = 'output window, operand 0']
    #allocation3 [shape = 's32[2]{0}', space=sflag, size = 0x8, scoped, tag = 'scoped memory for tpu_custom_call.1']
    %7 = vsyncpa [#allocation3], 0
    %s8 = scalar_lea.sflag [#allocation3], 1
    %9 = vsyncpa %s8, 0
    loop: start=0, step=1, limit=4
    $region2: #{tpu_custom_call.1} parent=1 // loop_pre_header
      _
    $region3: #{tpu_custom_call.1} parent=1 // loop_header
      %s11 = sphi 0, %s15
      %p12 = scmp.ge.s32.totalorder %s11, 4
      %s21 = sphi 0, %s23
      %s24 = sphi 0, %s21
      %s25 = sphi 0, %s24
      %s41 = sphi 0, %s25
      %s45 = sphi 0, %s45
      %s47 = sphi 0, %s45
      %s48 = sphi 0, %s47
      %s62 = sphi 0, %s48
      %s68 = sphi 0, %s70
      %s71 = sphi 0, %s68
      %s72 = sphi 0, %s71
      %s88 = sphi 0, %s72
    $region4: #{tpu_custom_call.1} parent=1 // loop_header_branch
      %14 = sbr.rel (%p12) target = $region8
    $region5: #{tpu_custom_call.1} parent=1 // loop_body
      %s16 = ssub.s32 %s11, 1
      %s17 = ssub.s32 %s11, 2
      %s18 = sadd.s32 %s11, 1
      %s19 = ssub.s32 %s11, %s18
      %p20 = scmp.eq.s32.totalorder %s19, 0
      %s22 = sadd.s32 %s21, 1
      %s23 = scalar_select %p20, %s21, %s22
      %p26 = pneg %p20
      %p27 = scmp.eq.s32.totalorder %s11, 1
      %p28 = por %p26, %p27
      %p29 = scmp.ne.s32.totalorder %s21, %s24
      %p30 = scmp.eq.s32.totalorder %s11, 0
      %p31 = por %p29, %p30
      %p32 = scmp.ne.s32.totalorder %s21, %s24
      %p33 = scmp.eq.s32.totalorder %s16, 1
      %p34 = por %p32, %p33
      %p35 = scmp.ne.s32.totalorder %s24, %s25
      %p36 = scmp.eq.s32.totalorder %s16, 0
      %p37 = por %p35, %p36
      %p38 = scmp.ne.s32.totalorder %s24, %s25
      %p39 = scmp.eq.s32.totalorder %s17, 1
      %p40 = por %p38, %p39
      %p42 = scmp.ne.s32.totalorder %s25, %s41
      %p43 = scmp.eq.s32.totalorder %s17, 0
      %p44 = por %p42, %p43
      %s46 = sadd.s32 %s45, 1
      %p49 = scmp.eq.s32.totalorder %s11, 1
      %p50 = scmp.ne.s32.totalorder %s45, %s47
      %p51 = scmp.eq.s32.totalorder %s11, 0
      %p52 = por %p50, %p51
      %p53 = scmp.ne.s32.totalorder %s45, %s47
      %p54 = scmp.eq.s32.totalorder %s16, 1
      %p55 = por %p53, %p54
      %p56 = scmp.ne.s32.totalorder %s47, %s48
      %p57 = scmp.eq.s32.totalorder %s16, 0
      %p58 = por %p56, %p57
      %p59 = scmp.ne.s32.totalorder %s47, %s48
      %p60 = scmp.eq.s32.totalorder %s17, 1
      %p61 = por %p59, %p60
      %p63 = scmp.ne.s32.totalorder %s48, %s62
      %p64 = scmp.eq.s32.totalorder %s17, 0
      %p65 = por %p63, %p64
      %s66 = ssub.s32 %s11, %s18
      %p67 = scmp.eq.s32.totalorder %s66, 0
      %s69 = sadd.s32 %s68, 1
      %s70 = scalar_select %p67, %s68, %s69
      %p73 = pneg %p67
      %p74 = scmp.eq.s32.totalorder %s11, 1
      %p75 = por %p73, %p74
      %p76 = scmp.ne.s32.totalorder %s68, %s71
      %p77 = scmp.eq.s32.totalorder %s11, 0
      %p78 = por %p76, %p77
      %p79 = scmp.ne.s32.totalorder %s68, %s71
      %p80 = scmp.eq.s32.totalorder %s16, 1
      %p81 = por %p79, %p80
      %p82 = scmp.ne.s32.totalorder %s71, %s72
      %p83 = scmp.eq.s32.totalorder %s16, 0
      %p84 = por %p82, %p83
      %p85 = scmp.ne.s32.totalorder %s71, %s72
      %p86 = scmp.eq.s32.totalorder %s17, 1
      %p87 = por %p85, %p86
      %p89 = scmp.ne.s32.totalorder %s72, %s88
      %p90 = scmp.eq.s32.totalorder %s17, 0
      %p91 = por %p89, %p90
      %p92 = scmp.le.s32.totalorder 1, %s11
      %p93 = scmp.lt.s32.totalorder %s11, 3
      %p94 = pnand %p92, %p93
      %p95 = pneg %p94
      // Predicated region
      $region9: #{tpu_custom_call.1} parent=5 // pred_check
        _
      $region10: #{tpu_custom_call.1} parent=5 // pred_check_branch
        %97 = sbr.rel (%p94) target = $region12
      $region11: #{tpu_custom_call.1} parent=5 // pred_region
        %s98 = ssub.s32 %s11, 1
        // Predicated region
        $region13: #{tpu_custom_call.1} parent=11 // pred_check
          %p99 = pneg %p58
        $region14: #{tpu_custom_call.1} parent=11 // pred_check_branch
          %101 = sbr.rel (%p99) target = $region16
        $region15: #{tpu_custom_call.1} parent=11 // pred_region
          _
        $region16: #{tpu_custom_call.1} parent=11 // pred_fallthru
          _
      $region12: #{tpu_custom_call.1} parent=5 // pred_fallthru
        _
      %p102 = scmp.lt.s32.totalorder %s11, 2
      // Predicated region
      $region17: #{tpu_custom_call.1} parent=5 // pred_check
        %p103 = pneg %p102
      $region18: #{tpu_custom_call.1} parent=5 // pred_check_branch
        %105 = sbr.rel (%p103) target = $region20
      $region19: #{tpu_custom_call.1} parent=5 // pred_region
        // Predicated region
        $region21: #{tpu_custom_call.1} parent=19 // pred_check
          %p106 = pneg %p31
        $region22: #{tpu_custom_call.1} parent=19 // pred_check_branch
          %108 = sbr.rel (%p106) target = $region24
        $region23: #{tpu_custom_call.1} parent=19 // pred_region
          %s109 = smul.u32 2, %s11
          %p110 = scmp.lt.s32.totalorder %s109, 3
          %s111 = scalar_select %p110, %s109, 3
          %s112 = smul.addr %s111, 8
          %s113 = scalar_lea.vmem %s0, %s112
          %s114 = smul.u32 2, %s11
        $region24: #{tpu_custom_call.1} parent=19 // pred_fallthru
          _
      $region20: #{tpu_custom_call.1} parent=5 // pred_fallthru
        _
      %p115 = scmp.le.s32.totalorder 1, %s11
      %p116 = scmp.lt.s32.totalorder %s11, 3
      %p117 = pnand %p115, %p116
      %p118 = pneg %p117
      // Predicated region
      $region25: #{tpu_custom_call.1} parent=5 // pred_check
        _
      $region26: #{tpu_custom_call.1} parent=5 // pred_check_branch
        %120 = sbr.rel (%p117) target = $region28
      $region27: #{tpu_custom_call.1} parent=5 // pred_region
        %s121 = ssub.s32 %s11, 1
        %s122 = smul.u32 2, %s16
        %p123 = scmp.lt.s32.totalorder %s122, 3
        %s124 = scalar_select %p123, %s122, 3
        %s125 = smul.addr %s124, 8
        %s126 = scalar_lea.vmem %s0, %s125
        %p127 = pneg %p37
        %p128 = pneg %p34
        %p129 = pneg %p58
        %p130 = pneg %p55
        %p131 = pneg %p84
        %p132 = pneg %p81
        %s133 = sand.u32 %s71, 1
        %s134 = scalar_lea.sflag [#allocation3], %s133
        %s135 = sand.u32 %s71, 1
        %s136 = smul.addr %s135, 16
        %s137 = scalar_lea.vmem [#allocation2], %s136
        %s138 = smul.u32 2, %s16
        %p139 = scmp.lt.s32.totalorder %s138, 3
        %s140 = scalar_select %p139, %s138, 3
        %s141 = smul.addr %s140, 8
        %s142 = scalar_lea.vmem %s0, %s141
        %s143 = smul.u32 2, %s16
        %s144 = smul.u32 2, %s16
        %v145 = vld [vmem:[%s142] sm:$0xff]
        %v146 = vld [vmem:[%s142 + $0x8] sm:$0xff]
        %v147 = vmul.f32 %v145, %v145
        %v148 = vmul.f32 %v146, %v146
        %v149 = vld [vmem:[%s1] sm:$0x1]
        %151 = vset.pattern.permute.xlu0 0
        %152 = vperm.xlu0 %151, %v147
        %v153 = vpop.permute.xlu0 %152
        %156 = vset.pattern.permute.xlu0 0
        %157 = vperm.xlu0 %156, %v148
        %v158 = vpop.permute.xlu0 %157
        %v160 = vlaneseq
        %v161 = vshrl.u32 %v160, 7
        %v162 = vsub.s32 0, %v161
        %v163 = vrot.slane %v149, %v162
        %v164 = vmul.f32 %v153, %v163
        %v165 = vmul.f32 %v158, %v163
        %v166 = vld [vmem:[%s1 + $0x1] sm:$0x1]
        %167 = vset.pattern.permute.xlu0 1
        %168 = vperm.xlu0 %167, %v147
        %v169 = vpop.permute.xlu0 %168
        %171 = vset.pattern.permute.xlu0 1
        %172 = vperm.xlu0 %171, %v148
        %v173 = vpop.permute.xlu0 %172
        %v175 = vlaneseq
        %v176 = vshrl.u32 %v175, 7
        %v177 = vsub.s32 0, %v176
        %v178 = vrot.slane %v166, %v177
        %v179 = vmul.f32 %v169, %v178
        %v180 = vmul.f32 %v173, %v178
        %v181 = vadd.f32 %v164, %v179
        %v182 = vadd.f32 %v165, %v180
        %v183 = vld [vmem:[%s1 + $0x2] sm:$0x1]
        %184 = vset.pattern.permute.xlu0 2
        %185 = vperm.xlu0 %184, %v147
        %v186 = vpop.permute.xlu0 %185
        %188 = vset.pattern.permute.xlu0 2
        %189 = vperm.xlu0 %188, %v148
        %v190 = vpop.permute.xlu0 %189
        %v192 = vlaneseq
        %v193 = vshrl.u32 %v192, 7
        %v194 = vsub.s32 0, %v193
        %v195 = vrot.slane %v183, %v194
        %v196 = vmul.f32 %v186, %v195
        %v197 = vmul.f32 %v190, %v195
        %v198 = vadd.f32 %v181, %v196
        %v199 = vadd.f32 %v182, %v197
        %v200 = vld [vmem:[%s1 + $0x3] sm:$0x1]
        %201 = vset.pattern.permute.xlu0 3
        %202 = vperm.xlu0 %201, %v147
        %v203 = vpop.permute.xlu0 %202
        %205 = vset.pattern.permute.xlu0 3
        %206 = vperm.xlu0 %205, %v148
        %v207 = vpop.permute.xlu0 %206
        %v209 = vlaneseq
        %v210 = vshrl.u32 %v209, 7
        %v211 = vsub.s32 0, %v210
        %v212 = vrot.slane %v200, %v211
        %v213 = vmul.f32 %v203, %v212
        %v214 = vmul.f32 %v207, %v212
        %v215 = vadd.f32 %v198, %v213
        %v216 = vadd.f32 %v199, %v214
        %v217 = vmul.f32 %v215, 1.442695
        %v218 = vpow.pop %v217
        %v219 = vmul.f32 %v216, 1.442695
        %v220 = vpow.pop %v219
        %221 = vst [vmem:[%s137] sm:$0xff] %v218
        %222 = vst [vmem:[%s137 + $0x8] sm:$0xff] %v220
        %s223 = sand.u32 %s71, 1
        %s224 = scalar_lea.sflag [#allocation3], %s223
        %s225 = sand.u32 %s71, 1
        %s226 = smul.addr %s225, 16
        %s227 = scalar_lea.vmem [#allocation2], %s226
        // Predicated region
        $region29: #{tpu_custom_call.1} parent=27 // pred_check
          %p228 = pneg %p81
        $region30: #{tpu_custom_call.1} parent=27 // pred_check_branch
          %230 = sbr.rel (%p228) target = $region32
        $region31: #{tpu_custom_call.1} parent=27 // pred_region
          %s231 = smul.u32 2, %s16
          %s233 = ssub.s32 256, 256
          %234 = vsyncadd %s224, %s233
          %s235 = smul.addr %s231, 128
          %s236 = scalar_lea.hbm %s2, %s235
          %s237 = sshll.u32 %s227, 4
          %s238 = int_to_ptr.vmem [resolvable:$true] %s237
          %243 = dma.vmem_to_hbm [thread:$0]  %s238, 256, %s236, %s224, 128, 128, 8
        $region32: #{tpu_custom_call.1} parent=27 // pred_fallthru
          _
      $region28: #{tpu_custom_call.1} parent=5 // pred_fallthru
        _
      %p244 = scmp.le.s32.totalorder 2, %s11
      // Predicated region
      $region33: #{tpu_custom_call.1} parent=5 // pred_check
        %p245 = pneg %p244
      $region34: #{tpu_custom_call.1} parent=5 // pred_check_branch
        %247 = sbr.rel (%p245) target = $region36
      $region35: #{tpu_custom_call.1} parent=5 // pred_region
        %s248 = ssub.s32 %s11, 2
        // Predicated region
        $region37: #{tpu_custom_call.1} parent=35 // pred_check
          %p249 = pneg %p87
        $region38: #{tpu_custom_call.1} parent=35 // pred_check_branch
          %251 = sbr.rel (%p249) target = $region40
        $region39: #{tpu_custom_call.1} parent=35 // pred_region
          %s252 = sand.u32 %s72, 1
          %s253 = scalar_lea.sflag [#allocation3], %s252
          %s254 = sand.u32 %s72, 1
          %s255 = smul.addr %s254, 16
          %s256 = scalar_lea.vmem [#allocation2], %s255
          %257 = dma.done %s253, 256
        $region40: #{tpu_custom_call.1} parent=35 // pred_fallthru
          _
      $region36: #{tpu_custom_call.1} parent=5 // pred_fallthru
        _
    $region6: #{tpu_custom_call.1} parent=1 // loop_footer
      %s15 = sadd.s32 1, %s11
    $region7: #{tpu_custom_call.1} parent=1 // loop_footer_branch
      %10 = sbr.rel target = $region3
    $region8: #{tpu_custom_call.1} parent=1 // loop_exit
      _
    %258 = vsyncpa [#allocation3], 1
    %s259 = scalar_lea.sflag [#allocation3], 1
    %260 = vsyncpa %s259, 1

</llo_original>
